<compile_context>
chip_gen: v7x
topology: tpu7x:2x2x1
jax: 0.10.0
libtpu: 0.0.40
codegen_flags: <defaults>
</compile_context>

<pallas_src>
import functools

import jax
import jax.numpy as jnp
from jax.experimental import pallas as pl
from jax.experimental.pallas import tpu as pltpu

# --- model hyperparameters (small, consistent with the module's __init__) ---
N_HIDDEN_LAYERS = 2          # must be >= 1 for the input-layer folding below
HIDDEN_UNITS = 32
INPUT_DIM = 16
OUTPUT_DIM = 8
TB_MAX = 4096                # max batch-tile rows per grid step
# activation passed into MyNet.__init__ -> Tanh (jnp.tanh), chosen deterministically.


def _round_up(n, m):
    return ((n + m - 1) // m) * m


def _choose_tb(batch):
    """Batch tile: as large as possible (amortize ~0.35us/step), but >=2 tiles when the
    batch permits so v7x's two TensorCores both get work; always sublane (8) aligned."""
    n_tiles = max(2, pl.cdiv(batch, TB_MAX))
    return min(TB_MAX, max(8, _round_up(pl.cdiv(batch, n_tiles), 8)))


def _vmem_limit(tb, param_bytes):
    """~2x the per-step footprint (double-buffered x/out tiles + live activations),
    plus resident params and headroom; capped well below v7x's 64 MiB physical VMEM."""
    stream = 2 * 2 * tb * (INPUT_DIM + OUTPUT_DIM) * 4     # double-buffered x / out tiles
    work = 4 * tb * HIDDEN_UNITS * 4                        # live f32 activations / spill slack
    total = stream + work + param_bytes + (2 << 20)
    return int(min(max(total, 4 << 20), 16 << 20))


def mlp_softmax_kernel(x_ref, w0_ref, b0_ref, wh_ref, bh_ref,
                       w_out_ref, b_out_ref, o_ref, *, n_extra_hidden):
    # fused (input Linear ∘ hidden0 Linear) + Tanh; x cast to bf16 in-kernel (VPU), f32 accum
    h = jnp.dot(x_ref[...].astype(jnp.bfloat16), w0_ref[...],
                preferred_element_type=jnp.float32) + b0_ref[...]
    h = jnp.tanh(h)

    # remaining hidden Linear + Tanh blocks (static trip count -> unrolled at trace time)
    for i in range(n_extra_hidden):
        h = jnp.dot(h.astype(jnp.bfloat16), wh_ref[i],
                    preferred_element_type=jnp.float32) + bh_ref[i]
        h = jnp.tanh(h)

    # output Linear: only the 8 real columns (no lane padding)
    logits = jnp.dot(h.astype(jnp.bfloat16), w_out_ref[...],
                     preferred_element_type=jnp.float32) + b_out_ref[...]

    # numerically stable softmax over dim=1 (8 columns); exact division so rows sum to 1
    m = jnp.max(logits, axis=1, keepdims=True)
    e = jnp.exp(logits - m)
    o_ref[...] = e / jnp.sum(e, axis=1, keepdims=True)


def mynet_forward(x, kernel_params, *, tb=None):
    """x: (batch, INPUT_DIM) f32. Returns (batch, OUTPUT_DIM) f32 softmax probs."""
    w0, b0, wh, bh, w_out, b_out, n_extra = kernel_params
    batch = x.shape[0]
    if x.dtype != jnp.float32:
        x = x.astype(jnp.float32)

    if tb is None:
        tb = _choose_tb(batch)
    tb = max(8, _round_up(tb, 8))
    grid = (pl.cdiv(batch, tb),)          # ragged last tile handled by Pallas OOB masking

    param_bytes = sum(int(p.size) * p.dtype.itemsize
                      for p in (w0, b0, wh, bh, w_out, b_out))
    kernel = functools.partial(mlp_softmax_kernel, n_extra_hidden=n_extra)

    out = pl.pallas_call(
        kernel,
        out_shape=jax.ShapeDtypeStruct((batch, OUTPUT_DIM), jnp.float32),
        grid=grid,
        in_specs=[
            pl.BlockSpec((tb, INPUT_DIM), lambda i: (i, 0)),      # x: streamed per tile (f32)
            pl.BlockSpec(w0.shape, lambda i: (0, 0)),             # weights/biases resident
            pl.BlockSpec(b0.shape, lambda i: (0, 0)),
            pl.BlockSpec(wh.shape, lambda i: (0, 0, 0)),
            pl.BlockSpec(bh.shape, lambda i: (0, 0, 0)),
            pl.BlockSpec(w_out.shape, lambda i: (0, 0)),
            pl.BlockSpec(b_out.shape, lambda i: (0, 0)),
        ],
        out_specs=pl.BlockSpec((tb, OUTPUT_DIM), lambda i: (i, 0)),   # 32 B/row HBM writeback
        compiler_params=pltpu.CompilerParams(
            dimension_semantics=("parallel",),                        # megacore-shard batch tiles
            vmem_limit_bytes=_vmem_limit(tb, param_bytes)),
    )(x, w0, b0, wh, bh, w_out, b_out)

    return out


def init_params(key):
    """Deterministic logical (f32) parameters, PyTorch-Linear-style uniform init.
    Weights stored pre-transposed as (in_features, out_features) so y = x @ W + b."""
    ks = jax.random.split(key, 2 + N_HIDDEN_LAYERS)

    def lin(k, fan_in, fan_out):
        bound = 1.0 / jnp.sqrt(jnp.float32(fan_in))
        kw, kb = jax.random.split(k)
        w = jax.random.uniform(kw, (fan_in, fan_out), jnp.float32, -bound, bound)
        b = jax.random.uniform(kb, (fan_out,), jnp.float32, -bound, bound)
        return w, b

    w_in, b_in = lin(ks[0], INPUT_DIM, HIDDEN_UNITS)
    whs, bhs = [], []
    for i in range(N_HIDDEN_LAYERS):
        w, b = lin(ks[1 + i], HIDDEN_UNITS, HIDDEN_UNITS)
        whs.append(w)
        bhs.append(b)
    wh = jnp.stack(whs, axis=0)                  # (n_layers, H, H)
    bh = jnp.stack(bhs, axis=0)                  # (n_layers, H)
    w_out, b_out = lin(ks[1 + N_HIDDEN_LAYERS], HIDDEN_UNITS, OUTPUT_DIM)
    return w_in, b_in, wh, bh, w_out, b_out


def prep_kernel_params(params):
    """Kernel layout: input Linear folded into hidden0 (no activation between them),
    bf16 weights for the MXU, 2-D lane-aligned f32 biases."""
    w_in, b_in, wh, bh, w_out, b_out = params
    n_layers = wh.shape[0]
    assert n_layers >= 1, "input-layer folding requires at least one hidden layer"

    # fold: hidden0(input(x)) == x @ (W_in @ Wh0) + (b_in @ Wh0 + bh0), computed in f32
    w0 = w_in @ wh[0]                                    # (INPUT_DIM, H)
    b0 = b_in @ wh[0] + bh[0]                            # (H,)

    if n_layers > 1:
        wh_rest = wh[1:]
        bh_rest = bh[1:].reshape(n_layers - 1, 1, HIDDEN_UNITS)
    else:  # dummy (never read: n_extra == 0), keeps pallas_call signature uniform
        wh_rest = jnp.zeros((1, HIDDEN_UNITS, HIDDEN_UNITS), jnp.float32)
        bh_rest = jnp.zeros((1, 1, HIDDEN_UNITS), jnp.float32)

    return (w0.astype(jnp.bfloat16),
            b0.reshape(1, HIDDEN_UNITS),
            wh_rest.astype(jnp.bfloat16),
            bh_rest,
            w_out.astype(jnp.bfloat16),
            b_out.reshape(1, OUTPUT_DIM),
            n_layers - 1)


def mynet_reference(x, params):
    """Pure-JAX f32 reference (module semantics) for correctness checking."""
    w_in, b_in, wh, bh, w_out, b_out = params
    h = x @ w_in + b_in
    for i in range(wh.shape[0]):
        h = jnp.tanh(h @ wh[i] + bh[i])
    logits = h @ w_out + b_out
    return jax.nn.softmax(logits, axis=1)


if __name__ == "__main__":
    key = jax.random.PRNGKey(0)
    k_x, k_x2, k_p = jax.random.split(key, 3)
    params = init_params(k_p)
    kparams = prep_kernel_params(params)

    # small demo batch (single grid step, block == full array)
    x = jax.random.normal(k_x, (8, INPUT_DIM), jnp.float32)
    out = jax.block_until_ready(mynet_forward(x, kparams))
    ref = mynet_reference(x, params)
    assert out.shape == (8, OUTPUT_DIM)
    assert jnp.allclose(out, ref, atol=2e-2, rtol=2e-2), "Pallas output mismatch vs reference"
    assert jnp.allclose(jnp.sum(out, axis=1), jnp.ones((8,)), atol=1e-3)

    # multi-tile grid with a ragged last tile (tb=8 -> 7 grid steps, 6 OOB tail rows dropped)
    x2 = jax.random.normal(k_x2, (50, INPUT_DIM), jnp.float32)
    out2 = jax.block_until_ready(mynet_forward(x2, kparams, tb=8))
    ref2 = mynet_reference(x2, params)
    assert out2.shape == (50, OUTPUT_DIM)
    assert jnp.allclose(out2, ref2, atol=2e-2, rtol=2e-2), "Pallas output mismatch (tiled) vs reference"
    assert jnp.allclose(jnp.sum(out2, axis=1), jnp.ones((50,)), atol=1e-3)

    # default adaptive tile: >=2 grid steps so both v7x TensorCores get work
    out3 = jax.block_until_ready(mynet_forward(x2, kparams))
    assert out3.shape == (50, OUTPUT_DIM)
    assert jnp.allclose(out3, ref2, atol=2e-2, rtol=2e-2), "Pallas output mismatch (auto-tb) vs reference"
    assert jnp.allclose(jnp.sum(out3, axis=1), jnp.ones((50,)), atol=1e-3)

    print("KERNEL_OK")
</pallas_src>

<mosaic_0001>
module attributes {stable_mosaic.version = 11 : i64} {
  func.func @mlp_softmax_kernel(%arg0: i32, %arg1: memref<8x16xf32, #tpu.memory_space<vmem>>, %arg2: memref<16x32xbf16, #tpu.memory_space<vmem>>, %arg3: memref<1x32xf32, #tpu.memory_space<vmem>>, %arg4: memref<1x32x32xbf16, #tpu.memory_space<vmem>>, %arg5: memref<1x1x32xf32, #tpu.memory_space<vmem>>, %arg6: memref<32x8xbf16, #tpu.memory_space<vmem>>, %arg7: memref<1x8xf32, #tpu.memory_space<vmem>>, %arg8: memref<8x8xf32, #tpu.memory_space<vmem>>) attributes {dimension_semantics = [#tpu.dimension_semantics<parallel>], iteration_bounds = array<i64: 1>, scalar_prefetch = 0 : i64, scratch_operands = 0 : i64, tpu.core_type = #tpu.core_type<tc>, window_params = [{transform_indices = @transform_0, window_bounds = array<i64: 8, 16>}, {pipeline_mode = #tpu.pipeline_mode<synchronous>, transform_indices = @transform_1, window_bounds = array<i64: 16, 32>}, {pipeline_mode = #tpu.pipeline_mode<synchronous>, transform_indices = @transform_2, window_bounds = array<i64: 1, 32>}, {pipeline_mode = #tpu.pipeline_mode<synchronous>, transform_indices = @transform_3, window_bounds = array<i64: 1, 32, 32>}, {pipeline_mode = #tpu.pipeline_mode<synchronous>, transform_indices = @transform_4, window_bounds = array<i64: 1, 1, 32>}, {pipeline_mode = #tpu.pipeline_mode<synchronous>, transform_indices = @transform_5, window_bounds = array<i64: 32, 8>}, {pipeline_mode = #tpu.pipeline_mode<synchronous>, transform_indices = @transform_6, window_bounds = array<i64: 1, 8>}, {transform_indices = @transform_7, window_bounds = array<i64: 8, 8>}]} {
    %c0 = arith.constant 0 : index
    %c0_0 = arith.constant 0 : index
    %0 = vector.load %arg1[%c0, %c0_0] : memref<8x16xf32, #tpu.memory_space<vmem>>, vector<8x16xf32>
    %1 = arith.truncf %0 : vector<8x16xf32> to vector<8x16xbf16>
    %c0_1 = arith.constant 0 : index
    %c0_2 = arith.constant 0 : index
    %2 = vector.load %arg2[%c0_1, %c0_2] : memref<16x32xbf16, #tpu.memory_space<vmem>>, vector<16x32xbf16>
    %cst = arith.constant dense<0.000000e+00> : vector<8x32xf32>
    %3 = tpu.matmul %1, %2, %cst {dimension_numbers = #tpu.dot_dimension_numbers<[1], [0], [0], [1], [0, 0, 1, 1], [], []>} : vector<8x16xbf16>, vector<16x32xbf16>, vector<8x32xf32> -> vector<8x32xf32>
    %c0_3 = arith.constant 0 : index
    %c0_4 = arith.constant 0 : index
    %4 = vector.load %arg3[%c0_3, %c0_4] : memref<1x32xf32, #tpu.memory_space<vmem>>, vector<1x32xf32>
    %5 = vector.broadcast %4 : vector<1x32xf32> to vector<8x32xf32>
    %6 = arith.addf %3, %5 : vector<8x32xf32>
    %7 = math.tanh %6 : vector<8x32xf32>
    %8 = arith.truncf %7 : vector<8x32xf32> to vector<8x32xbf16>
    %c0_5 = arith.constant 0 : index
    %c0_6 = arith.constant 0 : index
    %c0_7 = arith.constant 0 : index
    %9 = vector.load %arg4[%c0_5, %c0_6, %c0_7] : memref<1x32x32xbf16, #tpu.memory_space<vmem>>, vector<1x32x32xbf16>
    %10 = vector.shape_cast %9 : vector<1x32x32xbf16> to vector<32x32xbf16>
    %cst_8 = arith.constant dense<0.000000e+00> : vector<8x32xf32>
    %11 = tpu.matmul %8, %10, %cst_8 {dimension_numbers = #tpu.dot_dimension_numbers<[1], [0], [0], [1], [0, 0, 1, 1], [], []>} : vector<8x32xbf16>, vector<32x32xbf16>, vector<8x32xf32> -> vector<8x32xf32>
    %c0_9 = arith.constant 0 : index
    %c0_10 = arith.constant 0 : index
    %c0_11 = arith.constant 0 : index
    %12 = vector.load %arg5[%c0_9, %c0_10, %c0_11] : memref<1x1x32xf32, #tpu.memory_space<vmem>>, vector<1x1x32xf32>
    %13 = vector.shape_cast %12 : vector<1x1x32xf32> to vector<1x32xf32>
    %14 = vector.broadcast %13 : vector<1x32xf32> to vector<8x32xf32>
    %15 = arith.addf %11, %14 : vector<8x32xf32>
    %16 = math.tanh %15 : vector<8x32xf32>
    %17 = arith.truncf %16 : vector<8x32xf32> to vector<8x32xbf16>
    %c0_12 = arith.constant 0 : index
    %c0_13 = arith.constant 0 : index
    %18 = vector.load %arg6[%c0_12, %c0_13] : memref<32x8xbf16, #tpu.memory_space<vmem>>, vector<32x8xbf16>
    %cst_14 = arith.constant dense<0.000000e+00> : vector<8x8xf32>
    %19 = tpu.matmul %17, %18, %cst_14 {dimension_numbers = #tpu.dot_dimension_numbers<[1], [0], [0], [1], [0, 0, 1, 1], [], []>} : vector<8x32xbf16>, vector<32x8xbf16>, vector<8x8xf32> -> vector<8x8xf32>
    %c0_15 = arith.constant 0 : index
    %c0_16 = arith.constant 0 : index
    %20 = vector.load %arg7[%c0_15, %c0_16] : memref<1x8xf32, #tpu.memory_space<vmem>>, vector<1x8xf32>
    %21 = vector.broadcast %20 : vector<1x8xf32> to vector<8x8xf32>
    %22 = arith.addf %19, %21 : vector<8x8xf32>
    %cst_17 = arith.constant dense<0xFF800000> : vector<8xf32>
    %23 = vector.multi_reduction <maximumf>, %22, %cst_17 [1] : vector<8x8xf32> to vector<8xf32>
    %24 = vector.shape_cast %23 : vector<8xf32> to vector<8x1xf32>
    %25 = vector.broadcast %24 : vector<8x1xf32> to vector<8x8xf32>
    %26 = arith.subf %22, %25 : vector<8x8xf32>
    %27 = math.exp %26 : vector<8x8xf32>
    %cst_18 = arith.constant dense<0.000000e+00> : vector<8xf32>
    %28 = vector.multi_reduction <add>, %27, %cst_18 [1] : vector<8x8xf32> to vector<8xf32>
    %29 = vector.shape_cast %28 : vector<8xf32> to vector<8x1xf32>
    %30 = vector.broadcast %29 : vector<8x1xf32> to vector<8x8xf32>
    %31 = arith.divf %27, %30 : vector<8x8xf32>
    %c0_19 = arith.constant 0 : index
    %c0_20 = arith.constant 0 : index
    %32 = vector.load %arg8[%c0_19, %c0_20] : memref<8x8xf32, #tpu.memory_space<vmem>>, vector<8x8xf32>
    tpu.vector_store %arg8[%c0_19, %c0_20], %31 {strides = array<i32>} : memref<8x8xf32, #tpu.memory_space<vmem>>, vector<8x8xf32>,
    return
  }
  func.func @transform_0(%arg0: i32) -> (i32, i32) {
    %c0_i32 = arith.constant 0 : i32
    %c0_i32_0 = arith.constant 0 : i32
    return %arg0, %c0_i32 : i32, i32
  }
  func.func @transform_1(%arg0: i32) -> (i32, i32) {
    %c0_i32 = arith.constant 0 : i32
    %c0_i32_0 = arith.constant 0 : i32
    %c0_i32_1 = arith.constant 0 : i32
    return %c0_i32, %c0_i32_0 : i32, i32
  }
  func.func @transform_2(%arg0: i32) -> (i32, i32) {
    %c0_i32 = arith.constant 0 : i32
    %c0_i32_0 = arith.constant 0 : i32
    %c0_i32_1 = arith.constant 0 : i32
    return %c0_i32, %c0_i32_0 : i32, i32
  }
  func.func @transform_3(%arg0: i32) -> (i32, i32, i32) {
    %c0_i32 = arith.constant 0 : i32
    %c0_i32_0 = arith.constant 0 : i32
    %c0_i32_1 = arith.constant 0 : i32
    %c0_i32_2 = arith.constant 0 : i32
    return %c0_i32, %c0_i32_0, %c0_i32_1 : i32, i32, i32
  }
  func.func @transform_4(%arg0: i32) -> (i32, i32, i32) {
    %c0_i32 = arith.constant 0 : i32
    %c0_i32_0 = arith.constant 0 : i32
    %c0_i32_1 = arith.constant 0 : i32
    %c0_i32_2 = arith.constant 0 : i32
    return %c0_i32, %c0_i32_0, %c0_i32_1 : i32, i32, i32
  }
  func.func @transform_5(%arg0: i32) -> (i32, i32) {
    %c0_i32 = arith.constant 0 : i32
    %c0_i32_0 = arith.constant 0 : i32
    %c0_i32_1 = arith.constant 0 : i32
    return %c0_i32, %c0_i32_0 : i32, i32
  }
  func.func @transform_6(%arg0: i32) -> (i32, i32) {
    %c0_i32 = arith.constant 0 : i32
    %c0_i32_0 = arith.constant 0 : i32
    %c0_i32_1 = arith.constant 0 : i32
    return %c0_i32, %c0_i32_0 : i32, i32
  }
  func.func @transform_7(%arg0: i32) -> (i32, i32) {
    %c0_i32 = arith.constant 0 : i32
    %c0_i32_0 = arith.constant 0 : i32
    return %arg0, %c0_i32 : i32, i32
  }
}

</mosaic_0001>

<llo_original>
// kernel: tpu_custom_call.1
$region0: #{tpu_custom_call.1}
  #allocation0 [shape = 'u32[]', space=smem, size = 0x4, offset = 0x4, fixed_abs, tag = 'smem constant byte address 0x4 - core index']
  #allocation1 [shape = 'u32[144,128]{1,0:T(1,128)}', space=vmem, size = 0x12000, scoped, tag = 'internal scratch']
  %s0 = inlined_call_operand.vmem [shape: f32[8,16], index: 0, kind: input, shape index: {}]
  %s1 = inlined_call_operand.hbm [shape: bf16[16,32], index: 1, kind: input, shape index: {}]
  %s2 = inlined_call_operand.vmem [shape: f32[1,32], index: 2, kind: input, shape index: {}]
  %s3 = inlined_call_operand.vmem [shape: bf16[1,32,32], index: 3, kind: input, shape index: {}]
  %s4 = inlined_call_operand.vmem [shape: f32[1,1,32], index: 4, kind: input, shape index: {}]
  %s5 = inlined_call_operand.vmem [shape: bf16[32,8], index: 5, kind: input, shape index: {}]
  %s6 = inlined_call_operand.vmem [shape: f32[1,8], index: 6, kind: input, shape index: {}]
  %s7 = inlined_call_operand.hbm [shape: f32[8,8], index: 7, kind: output, shape index: {}]
  %s8 = sld [smem:[#allocation0]]
  $region42: #{tpu_custom_call.1} parent=0
    _
  %s10 = ssub.s32 1, %s8
  %s11 = scalar_select 0, %s10, %s8
  $region1: #{tpu_custom_call.1} parent=0
    #allocation2 [shape = 'u8[4096]{0}', space=vmem, size = 0x1000, scoped, tag = 'input window, operand 1, single buffered']
    #allocation3 [shape = 's32[1]{0}', space=sflag, size = 0x4, scoped, tag = 'scoped memory for tpu_custom_call.1']
    #allocation4 [shape = 's32[1]{0}', space=sflag, size = 0x4, scoped, tag = 'scoped memory for tpu_custom_call.1']
    #allocation5 [shape = 'u8[4096]{0}', space=vmem, size = 0x1000, scoped, tag = 'output window, operand 0, single buffered']
    %12 = vsyncpa [#allocation3], 0
    %13 = vsyncpa [#allocation4], 0
    // Predicated region
    $region2: #{tpu_custom_call.1} parent=1 // pred_check
      _
    $region3: #{tpu_custom_call.1} parent=1 // pred_check_branch
      %15 = sbr.rel (0) target = $region5
    $region4: #{tpu_custom_call.1} parent=1 // pred_region
      _
    $region5: #{tpu_custom_call.1} parent=1 // pred_fallthru
      _
    // Predicated region
    $region6: #{tpu_custom_call.1} parent=1 // pred_check
      _
    $region7: #{tpu_custom_call.1} parent=1 // pred_check_branch
      %17 = sbr.rel (0) target = $region9
    $region8: #{tpu_custom_call.1} parent=1 // pred_region
      %s19 = ssub.s32 128, 128
      %20 = vsyncadd [#allocation3], %s19
      %s21 = sshll.u32 [#allocation2], 4
      %s22 = int_to_ptr.vmem [resolvable:$true] %s21
      %27 = dma.hbm_to_vmem [thread:$0]  %s1, 128, %s22, [#allocation3], 64, 64, 4
    $region9: #{tpu_custom_call.1} parent=1 // pred_fallthru
      _
    // Predicated region
    $region10: #{tpu_custom_call.1} parent=1 // pred_check
      _
    $region11: #{tpu_custom_call.1} parent=1 // pred_check_branch
      %29 = sbr.rel (0) target = $region13
    $region12: #{tpu_custom_call.1} parent=1 // pred_region
      _
    $region13: #{tpu_custom_call.1} parent=1 // pred_fallthru
      _
    // Predicated region
    $region14: #{tpu_custom_call.1} parent=1 // pred_check
      _
    $region15: #{tpu_custom_call.1} parent=1 // pred_check_branch
      %31 = sbr.rel (0) target = $region17
    $region16: #{tpu_custom_call.1} parent=1 // pred_region
      _
    $region17: #{tpu_custom_call.1} parent=1 // pred_fallthru
      _
    // Predicated region
    $region18: #{tpu_custom_call.1} parent=1 // pred_check
      _
    $region19: #{tpu_custom_call.1} parent=1 // pred_check_branch
      %33 = sbr.rel (0) target = $region21
    $region20: #{tpu_custom_call.1} parent=1 // pred_region
      _
    $region21: #{tpu_custom_call.1} parent=1 // pred_fallthru
      _
    // Predicated region
    $region22: #{tpu_custom_call.1} parent=1 // pred_check
      _
    $region23: #{tpu_custom_call.1} parent=1 // pred_check_branch
      %35 = sbr.rel (0) target = $region25
    $region24: #{tpu_custom_call.1} parent=1 // pred_region
      _
    $region25: #{tpu_custom_call.1} parent=1 // pred_fallthru
      _
    // Predicated region
    $region26: #{tpu_custom_call.1} parent=1 // pred_check
      _
    $region27: #{tpu_custom_call.1} parent=1 // pred_check_branch
      %37 = sbr.rel (0) target = $region29
    $region28: #{tpu_custom_call.1} parent=1 // pred_region
      _
    $region29: #{tpu_custom_call.1} parent=1 // pred_fallthru
      _
    // Predicated region
    $region30: #{tpu_custom_call.1} parent=1 // pred_check
      _
    $region31: #{tpu_custom_call.1} parent=1 // pred_check_branch
      %39 = sbr.rel (0) target = $region33
    $region32: #{tpu_custom_call.1} parent=1 // pred_region
      %40 = dma.done [#allocation3], 128
    $region33: #{tpu_custom_call.1} parent=1 // pred_fallthru
      _
    %v42 = vld [vmem:[%s0] sm:$0xff]
    %v43 = vpack.c.bf16 %v42, %v42
    %v44 = vld [vmem:[#allocation2] sm:$0xf]
    %v45 = vld [vmem:[#allocation2 + $0x4] sm:$0xf]
    %v46 = vld [vmem:[%s2] sm:$0x1]
    %v48 = vlaneseq
    %v49 = vshrl.u32 %v48, 7
    %v50 = vsub.s32 0, %v49
    %v51 = vrot.slane %v46, %v50
    %v55 = vunpack.c.l.b16 %v44
    %v56 = vunpack.c.l.b16 %v45
    %v57 = vpack.c.b16 %v56, %v55
    %vm59 = vcmask 130048
    %v61 = vsel %vm59, %v43, 0
    %63 = vmatprep.subr.bf16.mxu0 0
    %64 = vmatpush1.bf16.msra.mxu0 %v57
    %65 = vmatprep.subr.bf16.mxu0 0
    %66 = vmatpush1.bf16.msra.mxu0 0
    %67 = vmatprep.subr.bf16.mxu0 0
    %68 = vmatpush1.bf16.msra.mxu0 0
    %69 = vmatprep.subr.bf16.mxu0 0
    %70 = vmatpush1.bf16.msra.mxu0 0
    %71 = vmatprep.subr.bf16.mxu0 0
    %72 = vmatpush1.bf16.msra.mxu0 0
    %73 = vmatprep.subr.bf16.mxu0 0
    %74 = vmatpush1.bf16.msra.mxu0 0
    %75 = vmatprep.subr.bf16.mxu0 0
    %76 = vmatpush1.bf16.msra.mxu0 0
    %77 = vmatprep.subr.bf16.mxu0 0
    %78 = vmatpush1.bf16.msra.mxu0 0
    %79 = vmatprep.subr.bf16.mxu0 0
    %80 = vmatpush1.bf16.msra.mxu0 0
    %81 = vmatprep.subr.bf16.mxu0 0
    %82 = vmatpush1.bf16.msra.mxu0 0
    %83 = vmatprep.subr.bf16.mxu0 0
    %84 = vmatpush1.bf16.msra.mxu0 0
    %85 = vmatprep.subr.bf16.mxu0 0
    %86 = vmatpush1.bf16.msra.mxu0 0
    %87 = vmatprep.subr.bf16.mxu0 0
    %88 = vmatpush1.bf16.msra.mxu0 0
    %89 = vmatprep.subr.bf16.mxu0 0
    %90 = vmatpush1.bf16.msra.mxu0 0
    %91 = vmatprep.subr.bf16.mxu0 0
    %92 = vmatpush1.bf16.msra.mxu0 0
    %93 = vmatprep.subr.bf16.mxu0 0
    %94 = vmatpush1.bf16.msra.mxu0 0
    %95 = vmatprep.mubr.bf16.mxu0 0
    %96 = vmatmul.mubr.bf16.gmra.mrb[0].mxu0 %v61
    %v97 = vpop.f32.mrb[0].mxu0
    %v98 = vadd.f32 %v51, %v97
    %v99 = vpop.f32.mrb[0].mxu0
    %v100 = vpop.f32.mrb[0].mxu0
    %v101 = vpop.f32.mrb[0].mxu0
    %102 = vdwg.mxu0
    %v103 = vtanh.pop %v98
    %v104 = vpack.c.bf16 %v103, %v103
    %v105 = vld [vmem:[%s3] sm:$0xf]
    %v106 = vld [vmem:[%s3 + $0x4] sm:$0xf]
    %v107 = vld [vmem:[%s3 + $0x8] sm:$0xf]
    %v108 = vld [vmem:[%s3 + $0xc] sm:$0xf]
    %v109 = vld [vmem:[%s4] sm:$0x1]
    %v111 = vlaneseq
    %v112 = vshrl.u32 %v111, 7
    %v113 = vsub.s32 0, %v112
    %v114 = vrot.slane %v109, %v113
    %v120 = vunpack.c.l.b16 %v105
    %v121 = vunpack.c.l.b16 %v106
    %v122 = vunpack.c.l.b16 %v107
    %v123 = vunpack.c.l.b16 %v108
    %v124 = vpack.c.b16 %v121, %v120
    %v125 = vpack.c.b16 %v123, %v122
    %vm128 = vcmask 261120
    %v130 = vsel %vm128, %v104, 0
    %132 = vmatprep.subr.bf16.mxu0 0
    %133 = vmatpush1.bf16.msra.mxu0 %v124
    %134 = vmatprep.subr.bf16.mxu0 0
    %135 = vmatpush1.bf16.msra.mxu0 %v125
    %136 = vmatprep.subr.bf16.mxu0 0
    %137 = vmatpush1.bf16.msra.mxu0 0
    %138 = vmatprep.subr.bf16.mxu0 0
    %139 = vmatpush1.bf16.msra.mxu0 0
    %140 = vmatprep.subr.bf16.mxu0 0
    %141 = vmatpush1.bf16.msra.mxu0 0
    %142 = vmatprep.subr.bf16.mxu0 0
    %143 = vmatpush1.bf16.msra.mxu0 0
    %144 = vmatprep.subr.bf16.mxu0 0
    %145 = vmatpush1.bf16.msra.mxu0 0
    %146 = vmatprep.subr.bf16.mxu0 0
    %147 = vmatpush1.bf16.msra.mxu0 0
    %148 = vmatprep.subr.bf16.mxu0 0
    %149 = vmatpush1.bf16.msra.mxu0 0
    %150 = vmatprep.subr.bf16.mxu0 0
    %151 = vmatpush1.bf16.msra.mxu0 0
    %152 = vmatprep.subr.bf16.mxu0 0
    %153 = vmatpush1.bf16.msra.mxu0 0
    %154 = vmatprep.subr.bf16.mxu0 0
    %155 = vmatpush1.bf16.msra.mxu0 0
    %156 = vmatprep.subr.bf16.mxu0 0
    %157 = vmatpush1.bf16.msra.mxu0 0
    %158 = vmatprep.subr.bf16.mxu0 0
    %159 = vmatpush1.bf16.msra.mxu0 0
    %160 = vmatprep.subr.bf16.mxu0 0
    %161 = vmatpush1.bf16.msra.mxu0 0
    %162 = vmatprep.subr.bf16.mxu0 0
    %163 = vmatpush1.bf16.msra.mxu0 0
    %164 = vmatprep.mubr.bf16.mxu0 0
    %165 = vmatmul.mubr.bf16.gmra.mrb[0].mxu0 %v130
    %v166 = vpop.f32.mrb[0].mxu0
    %v167 = vadd.f32 %v114, %v166
    %v168 = vpop.f32.mrb[0].mxu0
    %v169 = vpop.f32.mrb[0].mxu0
    %v170 = vpop.f32.mrb[0].mxu0
    %171 = vdwg.mxu0
    %v172 = vtanh.pop %v167
    %v173 = vpack.c.bf16 %v172, %v172
    %v174 = vld [vmem:[%s5] sm:$0xf]
    %v175 = vld [vmem:[%s5 + $0x4] sm:$0xf]
    %v176 = vld [vmem:[%s5 + $0x8] sm:$0xf]
    %v177 = vld [vmem:[%s5 + $0xc] sm:$0xf]
    %v178 = vld [vmem:[%s6] sm:$0x1]
    %v180 = vlaneseq
    %v181 = vshrl.u32 %v180, 7
    %v182 = vsub.s32 0, %v181
    %v183 = vrot.slane %v178, %v182
    %v189 = vunpack.c.l.b16 %v174
    %v190 = vunpack.c.l.b16 %v175
    %v191 = vunpack.c.l.b16 %v176
    %v192 = vunpack.c.l.b16 %v177
    %v193 = vpack.c.b16 %v190, %v189
    %v194 = vpack.c.b16 %v192, %v191
    %v198 = vsel %vm128, %v173, 0
    %200 = vmatprep.subr.bf16.mxu0 0
    %201 = vmatpush1.bf16.msra.mxu0 %v193
    %202 = vmatprep.subr.bf16.mxu0 0
    %203 = vmatpush1.bf16.msra.mxu0 %v194
    %204 = vmatprep.subr.bf16.mxu0 0
    %205 = vmatpush1.bf16.msra.mxu0 0
    %206 = vmatprep.subr.bf16.mxu0 0
    %207 = vmatpush1.bf16.msra.mxu0 0
    %208 = vmatprep.subr.bf16.mxu0 0
    %209 = vmatpush1.bf16.msra.mxu0 0
    %210 = vmatprep.subr.bf16.mxu0 0
    %211 = vmatpush1.bf16.msra.mxu0 0
    %212 = vmatprep.subr.bf16.mxu0 0
    %213 = vmatpush1.bf16.msra.mxu0 0
    %214 = vmatprep.subr.bf16.mxu0 0
    %215 = vmatpush1.bf16.msra.mxu0 0
    %216 = vmatprep.subr.bf16.mxu0 0
    %217 = vmatpush1.bf16.msra.mxu0 0
    %218 = vmatprep.subr.bf16.mxu0 0
    %219 = vmatpush1.bf16.msra.mxu0 0
    %220 = vmatprep.subr.bf16.mxu0 0
    %221 = vmatpush1.bf16.msra.mxu0 0
    %222 = vmatprep.subr.bf16.mxu0 0
    %223 = vmatpush1.bf16.msra.mxu0 0
    %224 = vmatprep.subr.bf16.mxu0 0
    %225 = vmatpush1.bf16.msra.mxu0 0
    %226 = vmatprep.subr.bf16.mxu0 0
    %227 = vmatpush1.bf16.msra.mxu0 0
    %228 = vmatprep.subr.bf16.mxu0 0
    %229 = vmatpush1.bf16.msra.mxu0 0
    %230 = vmatprep.subr.bf16.mxu0 0
    %231 = vmatpush1.bf16.msra.mxu0 0
    %232 = vmatprep.mubr.bf16.mxu0 0
    %233 = vmatmul.mubr.bf16.gmra.mrb[0].mxu0 %v198
    %v234 = vpop.f32.mrb[0].mxu0
    %v235 = vadd.f32 %v183, %v234
    %v236 = vpop.f32.mrb[0].mxu0
    %v237 = vpop.f32.mrb[0].mxu0
    %v238 = vpop.f32.mrb[0].mxu0
    %239 = vdwg.mxu0
    %vm240 = vcmask 64512
    %v241 = vsel %vm240, %v235, -inf
    %242 = vmax.xlane.f32.xlu0 %v241
    %v243 = vpop.xlane.xlu0 %242
    %v244 = vsub.f32 %v235, %v243
    %v245 = vmul.f32 %v244, 1.442695
    %v246 = vpow.pop %v245
    %v247 = vsel %vm240, %v246, 0.0
    %248 = vadd.xlane.f32.xlu0 %v247
    %v249 = vpop.xlane.xlu0 %248
    %v250 = vrcp.pop %v249
    %v251 = vmul.f32 %v246, %v250
    %252 = vst.msk [vmem:[#allocation5] sm:$0xff] %vm240, %v251
    // Predicated region
    $region34: #{tpu_custom_call.1} parent=1 // pred_check
      _
    $region35: #{tpu_custom_call.1} parent=1 // pred_check_branch
      %254 = sbr.rel (0) target = $region37
    $region36: #{tpu_custom_call.1} parent=1 // pred_region
      %s256 = ssub.s32 128, 128
      %257 = vsyncadd [#allocation4], %s256
      %s259 = sshll.u32 [#allocation5], 4
      %s260 = int_to_ptr.vmem [resolvable:$true] %s259
      %262 = dma.vmem_to_hbm [thread:$0]  %s260, 128, %s7, [#allocation4]
    $region37: #{tpu_custom_call.1} parent=1 // pred_fallthru
      _
    // Predicated region
    $region38: #{tpu_custom_call.1} parent=1 // pred_check
      _
    $region39: #{tpu_custom_call.1} parent=1 // pred_check_branch
      %264 = sbr.rel (0) target = $region41
    $region40: #{tpu_custom_call.1} parent=1 // pred_region
      %265 = dma.done [#allocation4], 128
    $region41: #{tpu_custom_call.1} parent=1 // pred_fallthru
      _
    %266 = vsyncpa [#allocation3], 1
    %267 = vsyncpa [#allocation4], 1

</llo_original>
